<compile_context>
chip_gen: v5e
topology: v5e:2x2
jax: 0.10.0
libtpu: 0.0.40
codegen_flags: <defaults>
</compile_context>

<pallas_src>
import jax
import jax.numpy as jnp
from jax import lax
from jax.experimental import pallas as pl
from jax.experimental.pallas import tpu as pltpu

LANE = 128
SUBLANE = 8


def _round_up(x, m):
    return (x + m - 1) // m * m


def matmul_bn_relu_kernel(x_ref, w_ref, scale_ref, shift_ref, o_ref):
    """One row tile: (tm, K) @ (K, Cp) on the MXU, then fused BN + ReLU.

    x_ref:     (tm, K)   bf16 im2col rows (K = 9*Cin)
    w_ref:     (K, Cp)   bf16 weights, Cout zero-padded to Cp (multiple of 128)
    scale_ref: (1, Cp)   f32 folded BN scale (0 in pad columns)
    shift_ref: (1, Cp)   f32 folded BN shift (0 in pad columns)
    o_ref:     (tm, Cp)  f32 lane-dense output
    """
    acc = jnp.dot(x_ref[...], w_ref[...], preferred_element_type=jnp.float32)
    y = jnp.maximum(acc * scale_ref[...] + shift_ref[...], 0.0)
    o_ref[...] = y.astype(o_ref.dtype)


def conv3x3_bn_relu(x, w, scale, shift, *, tm=256, compute_dtype=jnp.bfloat16):
    """3x3 'same' conv + folded BN + ReLU.

    x: (N, H, W, Cin) f32 NHWC; w: (3, 3, Cin, Cout) HWIO; scale/shift: (Cout,) f32.
    Returns (N, H, W, Cout) f32.
    """
    N, H, W, Cin = x.shape
    Cout = w.shape[-1]
    K = 9 * Cin
    Cp = _round_up(Cout, LANE)          # lane-dense output channels
    M = N * H * W
    tm = min(tm, _round_up(M, SUBLANE))
    Mp = _round_up(M, tm)

    # im2col in the wrapper (once, in HBM): the kernel then consumes a fixed-layout
    # (tm, 9*Cin) tile -> a single deep-K MXU matmul, no in-kernel slices/reshapes.
    xp = jnp.pad(x, ((0, 0), (1, 1), (1, 1), (0, 0)))     # zero pad == padding=1
    taps = [xp[:, dy:dy + H, dx:dx + W, :] for dy in range(3) for dx in range(3)]
    xcol = jnp.concatenate(taps, axis=-1).reshape(M, K)
    if Mp != M:
        xcol = jnp.pad(xcol, ((0, Mp - M), (0, 0)))
    xcol = xcol.astype(compute_dtype)

    w2 = jnp.pad(w.reshape(K, Cout), ((0, 0), (0, Cp - Cout))).astype(compute_dtype)
    scale_p = jnp.pad(scale.reshape(1, Cout), ((0, 0), (0, Cp - Cout))).astype(jnp.float32)
    shift_p = jnp.pad(shift.reshape(1, Cout), ((0, 0), (0, Cp - Cout))).astype(jnp.float32)

    out = pl.pallas_call(
        matmul_bn_relu_kernel,
        out_shape=jax.ShapeDtypeStruct((Mp, Cp), jnp.float32),
        grid=(Mp // tm,),
        in_specs=[
            pl.BlockSpec((tm, K), lambda i: (i, 0)),
            pl.BlockSpec((K, Cp), lambda i: (0, 0)),
            pl.BlockSpec((1, Cp), lambda i: (0, 0)),
            pl.BlockSpec((1, Cp), lambda i: (0, 0)),
        ],
        out_specs=pl.BlockSpec((tm, Cp), lambda i: (i, 0)),
        compiler_params=pltpu.CompilerParams(
            dimension_semantics=("parallel",),
            vmem_limit_bytes=48 * 1024 * 1024,
        ),
    )(xcol, w2, scale_p, shift_p)

    return out[:M, :Cout].reshape(N, H, W, Cout)


def fold_bn(conv_b, gamma, beta, mean, var, eps=1e-5):
    scale = gamma / jnp.sqrt(var + eps)
    shift = (conv_b - mean) * scale + beta
    return scale, shift


def double_conv(x_nchw, params):
    """Forward of DoubleConv. Input NCHW (PyTorch convention), output NCHW."""
    x = jnp.transpose(x_nchw, (0, 2, 3, 1))               # NCHW -> NHWC
    (w1, s1, b1), (w2, s2, b2) = params
    h = conv3x3_bn_relu(x, w1, s1, b1)
    y = conv3x3_bn_relu(h, w2, s2, b2)
    return jnp.transpose(y, (0, 3, 1, 2))                 # NHWC -> NCHW


def make_params(key, in_ch, mid_ch, out_ch):
    ks = jax.random.split(key, 10)
    # Conv1 + BN1
    w1 = jax.random.normal(ks[0], (3, 3, in_ch, mid_ch), jnp.float32) * 0.2
    cb1 = jax.random.normal(ks[1], (mid_ch,), jnp.float32) * 0.05
    g1 = 1.0 + 0.1 * jax.random.normal(ks[2], (mid_ch,), jnp.float32)
    be1 = 0.1 * jax.random.normal(ks[3], (mid_ch,), jnp.float32)
    m1 = 0.05 * jax.random.normal(ks[4], (mid_ch,), jnp.float32)
    v1 = 1.0 + 0.1 * jnp.abs(jax.random.normal(ks[5], (mid_ch,), jnp.float32))
    # Conv2 + BN2
    w2 = jax.random.normal(ks[6], (3, 3, mid_ch, out_ch), jnp.float32) * 0.2
    cb2 = jax.random.normal(ks[7], (out_ch,), jnp.float32) * 0.05
    g2 = 1.0 + 0.1 * jax.random.normal(ks[8], (out_ch,), jnp.float32)
    be2 = 0.1 * jax.random.normal(ks[9], (out_ch,), jnp.float32)
    m2 = jnp.zeros((out_ch,), jnp.float32)
    v2 = jnp.ones((out_ch,), jnp.float32)
    s1, sh1 = fold_bn(cb1, g1, be1, m1, v1)
    s2, sh2 = fold_bn(cb2, g2, be2, m2, v2)
    return ((w1, s1, sh1), (w2, s2, sh2)), ((w1, cb1, g1, be1, m1, v1),
                                            (w2, cb2, g2, be2, m2, v2))


def _ref_layer(x_nhwc, w, cb, g, be, m, v, eps=1e-5):
    """Pure-JAX reference for one (conv3x3 -> BN -> ReLU) layer.

    Rounds the matmul operands to bf16 exactly like the kernel does, so only the
    accumulation order differs -> tight tolerance is valid.
    """
    xq = x_nhwc.astype(jnp.bfloat16).astype(jnp.float32)
    wq = w.astype(jnp.bfloat16).astype(jnp.float32)
    y = lax.conv_general_dilated(
        xq, wq, window_strides=(1, 1), padding="SAME",
        dimension_numbers=("NHWC", "HWIO", "NHWC"),
        precision=lax.Precision.HIGHEST) + cb
    y = (y - m) / jnp.sqrt(v + eps) * g + be
    return jnp.maximum(y, 0.0)


if __name__ == "__main__":
    key = jax.random.PRNGKey(0)
    kx, kp = jax.random.split(key)

    N, Cin, H, W = 2, 4, 16, 16
    Cmid = Cout = 8

    x = jax.random.normal(kx, (N, Cin, H, W), jnp.float32)    # NCHW like PyTorch
    params, raw = make_params(kp, Cin, Cmid, Cout)

    out = jax.block_until_ready(double_conv(x, params))
    assert out.shape == (N, Cout, H, W), out.shape

    # Layer-wise correctness vs lax.conv reference (same bf16 operand rounding).
    x_nhwc = jnp.transpose(x, (0, 2, 3, 1))
    (w1, s1, b1), (w2, s2, b2) = params
    (rw1, cb1, g1, be1, m1, v1), (rw2, cb2, g2, be2, m2, v2) = raw

    h_k = jax.block_until_ready(conv3x3_bn_relu(x_nhwc, w1, s1, b1))
    h_r = _ref_layer(x_nhwc, rw1, cb1, g1, be1, m1, v1)
    assert jnp.allclose(h_k, h_r, atol=1e-4, rtol=1e-4), \
        float(jnp.max(jnp.abs(h_k - h_r)))

    y_k = jax.block_until_ready(conv3x3_bn_relu(h_k, w2, s2, b2))
    y_r = _ref_layer(h_k, rw2, cb2, g2, be2, m2, v2)
    assert jnp.allclose(y_k, y_r, atol=1e-4, rtol=1e-4), \
        float(jnp.max(jnp.abs(y_k - y_r)))

    # End-to-end output is the composition of the two checked layers.
    assert jnp.allclose(out, jnp.transpose(y_k, (0, 3, 1, 2)), atol=1e-5, rtol=1e-5)

    print("KERNEL_OK")
</pallas_src>

<mosaic_0001>
module attributes {stable_mosaic.version = 11 : i64} {
  func.func @matmul_bn_relu_kernel(%arg0: i32, %arg1: memref<256x36xbf16, #tpu.memory_space<vmem>>, %arg2: memref<36x128xbf16, #tpu.memory_space<vmem>>, %arg3: memref<1x128xf32, #tpu.memory_space<vmem>>, %arg4: memref<1x128xf32, #tpu.memory_space<vmem>>, %arg5: memref<256x128xf32, #tpu.memory_space<vmem>>) attributes {dimension_semantics = [#tpu.dimension_semantics<parallel>], iteration_bounds = array<i64: 2>, scalar_prefetch = 0 : i64, scratch_operands = 0 : i64, tpu.core_type = #tpu.core_type<tc>, window_params = [{transform_indices = @transform_0, window_bounds = array<i64: 256, 36>}, {pipeline_mode = #tpu.pipeline_mode<synchronous>, transform_indices = @transform_1, window_bounds = array<i64: 36, 128>}, {pipeline_mode = #tpu.pipeline_mode<synchronous>, transform_indices = @transform_2, window_bounds = array<i64: 1, 128>}, {pipeline_mode = #tpu.pipeline_mode<synchronous>, transform_indices = @transform_3, window_bounds = array<i64: 1, 128>}, {transform_indices = @transform_4, window_bounds = array<i64: 256, 128>}]} {
    %c0 = arith.constant 0 : index
    %c0_0 = arith.constant 0 : index
    %0 = vector.load %arg1[%c0, %c0_0] : memref<256x36xbf16, #tpu.memory_space<vmem>>, vector<256x36xbf16>
    %c0_1 = arith.constant 0 : index
    %c0_2 = arith.constant 0 : index
    %1 = vector.load %arg2[%c0_1, %c0_2] : memref<36x128xbf16, #tpu.memory_space<vmem>>, vector<36x128xbf16>
    %cst = arith.constant dense<0.000000e+00> : vector<256x128xf32>
    %2 = tpu.matmul %0, %1, %cst {dimension_numbers = #tpu.dot_dimension_numbers<[1], [0], [0], [1], [0, 0, 1, 1], [], []>} : vector<256x36xbf16>, vector<36x128xbf16>, vector<256x128xf32> -> vector<256x128xf32>
    %c0_3 = arith.constant 0 : index
    %c0_4 = arith.constant 0 : index
    %3 = vector.load %arg3[%c0_3, %c0_4] : memref<1x128xf32, #tpu.memory_space<vmem>>, vector<1x128xf32>
    %4 = vector.broadcast %3 : vector<1x128xf32> to vector<256x128xf32>
    %5 = arith.mulf %2, %4 : vector<256x128xf32>
    %c0_5 = arith.constant 0 : index
    %c0_6 = arith.constant 0 : index
    %6 = vector.load %arg4[%c0_5, %c0_6] : memref<1x128xf32, #tpu.memory_space<vmem>>, vector<1x128xf32>
    %7 = vector.broadcast %6 : vector<1x128xf32> to vector<256x128xf32>
    %8 = arith.addf %5, %7 : vector<256x128xf32>
    %cst_7 = arith.constant 0.000000e+00 : f32
    %9 = vector.broadcast %cst_7 : f32 to vector<256x128xf32>
    %10 = arith.maximumf %8, %9 : vector<256x128xf32>
    %c0_8 = arith.constant 0 : index
    %c0_9 = arith.constant 0 : index
    %11 = vector.load %arg5[%c0_8, %c0_9] : memref<256x128xf32, #tpu.memory_space<vmem>>, vector<256x128xf32>
    tpu.vector_store %arg5[%c0_8, %c0_9], %10 {strides = array<i32>} : memref<256x128xf32, #tpu.memory_space<vmem>>, vector<256x128xf32>,
    return
  }
  func.func @transform_0(%arg0: i32) -> (i32, i32) {
    %c0_i32 = arith.constant 0 : i32
    %c0_i32_0 = arith.constant 0 : i32
    return %arg0, %c0_i32 : i32, i32
  }
  func.func @transform_1(%arg0: i32) -> (i32, i32) {
    %c0_i32 = arith.constant 0 : i32
    %c0_i32_0 = arith.constant 0 : i32
    %c0_i32_1 = arith.constant 0 : i32
    return %c0_i32, %c0_i32_0 : i32, i32
  }
  func.func @transform_2(%arg0: i32) -> (i32, i32) {
    %c0_i32 = arith.constant 0 : i32
    %c0_i32_0 = arith.constant 0 : i32
    %c0_i32_1 = arith.constant 0 : i32
    return %c0_i32, %c0_i32_0 : i32, i32
  }
  func.func @transform_3(%arg0: i32) -> (i32, i32) {
    %c0_i32 = arith.constant 0 : i32
    %c0_i32_0 = arith.constant 0 : i32
    %c0_i32_1 = arith.constant 0 : i32
    return %c0_i32, %c0_i32_0 : i32, i32
  }
  func.func @transform_4(%arg0: i32) -> (i32, i32) {
    %c0_i32 = arith.constant 0 : i32
    %c0_i32_0 = arith.constant 0 : i32
    return %arg0, %c0_i32 : i32, i32
  }
}

</mosaic_0001>

<llo_original>
// kernel: tpu_custom_call.1
$region0: #{tpu_custom_call.1}
  #allocation0 [shape = 'u32[]', space=smem, size = 0x4, offset = 0x4, fixed_abs, tag = 'smem constant byte address 0x4 - core index']
  #allocation1 [shape = 'u32[72,128]{1,0:T(1,128)}', space=vmem, size = 0x9000, scoped, tag = 'internal scratch']
  %s0 = inlined_call_operand.vmem [shape: bf16[512,36], index: 0, kind: input, shape index: {}]
  %s1 = inlined_call_operand.vmem [shape: bf16[36,128], index: 1, kind: input, shape index: {}]
  %s2 = inlined_call_operand.vmem [shape: f32[1,128], index: 2, kind: input, shape index: {}]
  %s3 = inlined_call_operand.vmem [shape: f32[1,128], index: 3, kind: input, shape index: {}]
  %s4 = inlined_call_operand.hbm [shape: f32[512,128], index: 4, kind: output, shape index: {}]
  %s5 = sld [smem:[#allocation0]]
  $region49: #{tpu_custom_call.1} parent=0
    _
  %s7 = ssub.s32 1, %s5
  %s8 = scalar_select 0, %s7, %s5
  $region1: #{tpu_custom_call.1} parent=0
    #allocation2 [shape = 'u8[262144]{0}', space=vmem, size = 0x40000, scoped, tag = 'output window, operand 0']
    #allocation3 [shape = 's32[2]{0}', space=sflag, size = 0x8, scoped, tag = 'scoped memory for tpu_custom_call.1']
    %9 = vsyncpa [#allocation3], 0
    %s10 = scalar_lea.sflag [#allocation3], 1
    %11 = vsyncpa %s10, 0
    loop: start=0, step=1, limit=4
    $region2: #{tpu_custom_call.1} parent=1 // loop_pre_header
      _
    $region3: #{tpu_custom_call.1} parent=1 // loop_header
      %s13 = sphi 0, %s17
      %p14 = scmp.ge.s32.totalorder %s13, 4
      %s23 = sphi 0, %s25
      %s26 = sphi 0, %s23
      %s27 = sphi 0, %s26
      %s43 = sphi 0, %s27
      %s47 = sphi 0, %s47
      %s49 = sphi 0, %s47
      %s50 = sphi 0, %s49
      %s64 = sphi 0, %s50
      %s68 = sphi 0, %s68
      %s70 = sphi 0, %s68
      %s71 = sphi 0, %s70
      %s85 = sphi 0, %s71
      %s89 = sphi 0, %s89
      %s91 = sphi 0, %s89
      %s92 = sphi 0, %s91
      %s106 = sphi 0, %s92
      %s112 = sphi 0, %s114
      %s115 = sphi 0, %s112
      %s116 = sphi 0, %s115
      %s132 = sphi 0, %s116
    $region4: #{tpu_custom_call.1} parent=1 // loop_header_branch
      %16 = sbr.rel (%p14) target = $region8
    $region5: #{tpu_custom_call.1} parent=1 // loop_body
      %s18 = ssub.s32 %s13, 1
      %s19 = ssub.s32 %s13, 2
      %s20 = sadd.s32 %s13, 1
      %s21 = ssub.s32 %s13, %s20
      %p22 = scmp.eq.s32.totalorder %s21, 0
      %s24 = sadd.s32 %s23, 1
      %s25 = scalar_select %p22, %s23, %s24
      %p28 = pneg %p22
      %p29 = scmp.eq.s32.totalorder %s13, 1
      %p30 = por %p28, %p29
      %p31 = scmp.ne.s32.totalorder %s23, %s26
      %p32 = scmp.eq.s32.totalorder %s13, 0
      %p33 = por %p31, %p32
      %p34 = scmp.ne.s32.totalorder %s23, %s26
      %p35 = scmp.eq.s32.totalorder %s18, 1
      %p36 = por %p34, %p35
      %p37 = scmp.ne.s32.totalorder %s26, %s27
      %p38 = scmp.eq.s32.totalorder %s18, 0
      %p39 = por %p37, %p38
      %p40 = scmp.ne.s32.totalorder %s26, %s27
      %p41 = scmp.eq.s32.totalorder %s19, 1
      %p42 = por %p40, %p41
      %p44 = scmp.ne.s32.totalorder %s27, %s43
      %p45 = scmp.eq.s32.totalorder %s19, 0
      %p46 = por %p44, %p45
      %s48 = sadd.s32 %s47, 1
      %p51 = scmp.eq.s32.totalorder %s13, 1
      %p52 = scmp.ne.s32.totalorder %s47, %s49
      %p53 = scmp.eq.s32.totalorder %s13, 0
      %p54 = por %p52, %p53
      %p55 = scmp.ne.s32.totalorder %s47, %s49
      %p56 = scmp.eq.s32.totalorder %s18, 1
      %p57 = por %p55, %p56
      %p58 = scmp.ne.s32.totalorder %s49, %s50
      %p59 = scmp.eq.s32.totalorder %s18, 0
      %p60 = por %p58, %p59
      %p61 = scmp.ne.s32.totalorder %s49, %s50
      %p62 = scmp.eq.s32.totalorder %s19, 1
      %p63 = por %p61, %p62
      %p65 = scmp.ne.s32.totalorder %s50, %s64
      %p66 = scmp.eq.s32.totalorder %s19, 0
      %p67 = por %p65, %p66
      %s69 = sadd.s32 %s68, 1
      %p72 = scmp.eq.s32.totalorder %s13, 1
      %p73 = scmp.ne.s32.totalorder %s68, %s70
      %p74 = scmp.eq.s32.totalorder %s13, 0
      %p75 = por %p73, %p74
      %p76 = scmp.ne.s32.totalorder %s68, %s70
      %p77 = scmp.eq.s32.totalorder %s18, 1
      %p78 = por %p76, %p77
      %p79 = scmp.ne.s32.totalorder %s70, %s71
      %p80 = scmp.eq.s32.totalorder %s18, 0
      %p81 = por %p79, %p80
      %p82 = scmp.ne.s32.totalorder %s70, %s71
      %p83 = scmp.eq.s32.totalorder %s19, 1
      %p84 = por %p82, %p83
      %p86 = scmp.ne.s32.totalorder %s71, %s85
      %p87 = scmp.eq.s32.totalorder %s19, 0
      %p88 = por %p86, %p87
      %s90 = sadd.s32 %s89, 1
      %p93 = scmp.eq.s32.totalorder %s13, 1
      %p94 = scmp.ne.s32.totalorder %s89, %s91
      %p95 = scmp.eq.s32.totalorder %s13, 0
      %p96 = por %p94, %p95
      %p97 = scmp.ne.s32.totalorder %s89, %s91
      %p98 = scmp.eq.s32.totalorder %s18, 1
      %p99 = por %p97, %p98
      %p100 = scmp.ne.s32.totalorder %s91, %s92
      %p101 = scmp.eq.s32.totalorder %s18, 0
      %p102 = por %p100, %p101
      %p103 = scmp.ne.s32.totalorder %s91, %s92
      %p104 = scmp.eq.s32.totalorder %s19, 1
      %p105 = por %p103, %p104
      %p107 = scmp.ne.s32.totalorder %s92, %s106
      %p108 = scmp.eq.s32.totalorder %s19, 0
      %p109 = por %p107, %p108
      %s110 = ssub.s32 %s13, %s20
      %p111 = scmp.eq.s32.totalorder %s110, 0
      %s113 = sadd.s32 %s112, 1
      %s114 = scalar_select %p111, %s112, %s113
      %p117 = pneg %p111
      %p118 = scmp.eq.s32.totalorder %s13, 1
      %p119 = por %p117, %p118
      %p120 = scmp.ne.s32.totalorder %s112, %s115
      %p121 = scmp.eq.s32.totalorder %s13, 0
      %p122 = por %p120, %p121
      %p123 = scmp.ne.s32.totalorder %s112, %s115
      %p124 = scmp.eq.s32.totalorder %s18, 1
      %p125 = por %p123, %p124
      %p126 = scmp.ne.s32.totalorder %s115, %s116
      %p127 = scmp.eq.s32.totalorder %s18, 0
      %p128 = por %p126, %p127
      %p129 = scmp.ne.s32.totalorder %s115, %s116
      %p130 = scmp.eq.s32.totalorder %s19, 1
      %p131 = por %p129, %p130
      %p133 = scmp.ne.s32.totalorder %s116, %s132
      %p134 = scmp.eq.s32.totalorder %s19, 0
      %p135 = por %p133, %p134
      %p136 = scmp.le.s32.totalorder 1, %s13
      %p137 = scmp.lt.s32.totalorder %s13, 3
      %p138 = pnand %p136, %p137
      %p139 = pneg %p138
      // Predicated region
      $region9: #{tpu_custom_call.1} parent=5 // pred_check
        _
      $region10: #{tpu_custom_call.1} parent=5 // pred_check_branch
        %141 = sbr.rel (%p138) target = $region12
      $region11: #{tpu_custom_call.1} parent=5 // pred_region
        %s142 = ssub.s32 %s13, 1
        // Predicated region
        $region13: #{tpu_custom_call.1} parent=11 // pred_check
          %p143 = pneg %p60
        $region14: #{tpu_custom_call.1} parent=11 // pred_check_branch
          %145 = sbr.rel (%p143) target = $region16
        $region15: #{tpu_custom_call.1} parent=11 // pred_region
          _
        $region16: #{tpu_custom_call.1} parent=11 // pred_fallthru
          _
        // Predicated region
        $region17: #{tpu_custom_call.1} parent=11 // pred_check
          %p146 = pneg %p81
        $region18: #{tpu_custom_call.1} parent=11 // pred_check_branch
          %148 = sbr.rel (%p146) target = $region20
        $region19: #{tpu_custom_call.1} parent=11 // pred_region
          _
        $region20: #{tpu_custom_call.1} parent=11 // pred_fallthru
          _
        // Predicated region
        $region21: #{tpu_custom_call.1} parent=11 // pred_check
          %p149 = pneg %p102
        $region22: #{tpu_custom_call.1} parent=11 // pred_check_branch
          %151 = sbr.rel (%p149) target = $region24
        $region23: #{tpu_custom_call.1} parent=11 // pred_region
          _
        $region24: #{tpu_custom_call.1} parent=11 // pred_fallthru
          _
      $region12: #{tpu_custom_call.1} parent=5 // pred_fallthru
        _
      %p152 = scmp.lt.s32.totalorder %s13, 2
      // Predicated region
      $region25: #{tpu_custom_call.1} parent=5 // pred_check
        %p153 = pneg %p152
      $region26: #{tpu_custom_call.1} parent=5 // pred_check_branch
        %155 = sbr.rel (%p153) target = $region28
      $region27: #{tpu_custom_call.1} parent=5 // pred_region
        // Predicated region
        $region29: #{tpu_custom_call.1} parent=27 // pred_check
          %p156 = pneg %p33
        $region30: #{tpu_custom_call.1} parent=27 // pred_check_branch
          %158 = sbr.rel (%p156) target = $region32
        $region31: #{tpu_custom_call.1} parent=27 // pred_region
          %s159 = smul.u32 32, %s13
          %p160 = scmp.lt.s32.totalorder %s159, 63
          %s161 = scalar_select %p160, %s159, 63
          %s162 = smul.addr %s161, 4
          %s163 = scalar_lea.vmem %s0, %s162
          %s164 = smul.u32 32, %s13
        $region32: #{tpu_custom_call.1} parent=27 // pred_fallthru
          _
      $region28: #{tpu_custom_call.1} parent=5 // pred_fallthru
        _
      %p165 = scmp.le.s32.totalorder 1, %s13
      %p166 = scmp.lt.s32.totalorder %s13, 3
      %p167 = pnand %p165, %p166
      %p168 = pneg %p167
      // Predicated region
      $region33: #{tpu_custom_call.1} parent=5 // pred_check
        _
      $region34: #{tpu_custom_call.1} parent=5 // pred_check_branch
        %170 = sbr.rel (%p167) target = $region36
      $region35: #{tpu_custom_call.1} parent=5 // pred_region
        %s171 = ssub.s32 %s13, 1
        %s172 = smul.u32 32, %s18
        %p173 = scmp.lt.s32.totalorder %s172, 63
        %s174 = scalar_select %p173, %s172, 63
        %s175 = smul.addr %s174, 4
        %s176 = scalar_lea.vmem %s0, %s175
        %p177 = pneg %p39
        %p178 = pneg %p36
        %p179 = pneg %p60
        %p180 = pneg %p57
        %p181 = pneg %p81
        %p182 = pneg %p78
        %p183 = pneg %p102
        %p184 = pneg %p99
        %p185 = pneg %p128
        %p186 = pneg %p125
        %s187 = sand.u32 %s115, 1
        %s188 = scalar_lea.sflag [#allocation3], %s187
        %s189 = sand.u32 %s115, 1
        %s190 = smul.addr %s189, 256
        %s191 = scalar_lea.vmem [#allocation2], %s190
        %s192 = smul.u32 32, %s18
        %p193 = scmp.lt.s32.totalorder %s192, 63
        %s194 = scalar_select %p193, %s192, 63
        %s195 = smul.addr %s194, 4
        %s196 = scalar_lea.vmem %s0, %s195
        %s197 = smul.u32 32, %s18
        %s198 = smul.u32 32, %s18
        %v200 = vld [vmem:[%s196] sm:$0xf]
        %v201 = vld [vmem:[%s196 + $0x4] sm:$0xf]
        %v202 = vld [vmem:[%s196 + $0x8] sm:$0xf]
        %v203 = vld [vmem:[%s196 + $0xc] sm:$0xf]
        %v204 = vld [vmem:[%s196 + $0x10] sm:$0xf]
        %v205 = vld [vmem:[%s196 + $0x14] sm:$0xf]
        %v206 = vld [vmem:[%s196 + $0x18] sm:$0xf]
        %v207 = vld [vmem:[%s196 + $0x1c] sm:$0xf]
        %v208 = vld [vmem:[%s196 + $0x20] sm:$0xf]
        %v209 = vld [vmem:[%s196 + $0x24] sm:$0xf]
        %v210 = vld [vmem:[%s196 + $0x28] sm:$0xf]
        %v211 = vld [vmem:[%s196 + $0x2c] sm:$0xf]
        %v212 = vld [vmem:[%s196 + $0x30] sm:$0xf]
        %v213 = vld [vmem:[%s196 + $0x34] sm:$0xf]
        %v214 = vld [vmem:[%s196 + $0x38] sm:$0xf]
        %v215 = vld [vmem:[%s196 + $0x3c] sm:$0xf]
        %v216 = vld [vmem:[%s196 + $0x40] sm:$0xf]
        %v217 = vld [vmem:[%s196 + $0x44] sm:$0xf]
        %v218 = vld [vmem:[%s196 + $0x48] sm:$0xf]
        %v219 = vld [vmem:[%s196 + $0x4c] sm:$0xf]
        %v220 = vld [vmem:[%s196 + $0x50] sm:$0xf]
        %v221 = vld [vmem:[%s196 + $0x54] sm:$0xf]
        %v222 = vld [vmem:[%s196 + $0x58] sm:$0xf]
        %v223 = vld [vmem:[%s196 + $0x5c] sm:$0xf]
        %v224 = vld [vmem:[%s196 + $0x60] sm:$0xf]
        %v225 = vld [vmem:[%s196 + $0x64] sm:$0xf]
        %v226 = vld [vmem:[%s196 + $0x68] sm:$0xf]
        %v227 = vld [vmem:[%s196 + $0x6c] sm:$0xf]
        %v228 = vld [vmem:[%s196 + $0x70] sm:$0xf]
        %v229 = vld [vmem:[%s196 + $0x74] sm:$0xf]
        %v230 = vld [vmem:[%s196 + $0x78] sm:$0xf]
        %v231 = vld [vmem:[%s196 + $0x7c] sm:$0xf]
        %v232 = vld [vmem:[%s1] sm:$0xf]
        %v233 = vld [vmem:[%s1 + $0x4] sm:$0xf]
        %v234 = vld [vmem:[%s1 + $0x8] sm:$0xf]
        %v235 = vld [vmem:[%s1 + $0xc] sm:$0xf]
        %v236 = vld [vmem:[%s1 + $0x10] sm:$0x3]
        %v269 = vunpack.c.l.b16 %v200
        %v270 = vunpack.c.l.b16 %v201
        %v271 = vunpack.c.l.b16 %v202
        %v272 = vunpack.c.l.b16 %v203
        %v273 = vunpack.c.l.b16 %v204
        %v274 = vunpack.c.l.b16 %v205
        %v275 = vunpack.c.l.b16 %v206
        %v276 = vunpack.c.l.b16 %v207
        %v277 = vunpack.c.l.b16 %v208
        %v278 = vunpack.c.l.b16 %v209
        %v279 = vunpack.c.l.b16 %v210
        %v280 = vunpack.c.l.b16 %v211
        %v281 = vunpack.c.l.b16 %v212
        %v282 = vunpack.c.l.b16 %v213
        %v283 = vunpack.c.l.b16 %v214
        %v284 = vunpack.c.l.b16 %v215
        %v285 = vunpack.c.l.b16 %v216
        %v286 = vunpack.c.l.b16 %v217
        %v287 = vunpack.c.l.b16 %v218
        %v288 = vunpack.c.l.b16 %v219
        %v289 = vunpack.c.l.b16 %v220
        %v290 = vunpack.c.l.b16 %v221
        %v291 = vunpack.c.l.b16 %v222
        %v292 = vunpack.c.l.b16 %v223
        %v293 = vunpack.c.l.b16 %v224
        %v294 = vunpack.c.l.b16 %v225
        %v295 = vunpack.c.l.b16 %v226
        %v296 = vunpack.c.l.b16 %v227
        %v297 = vunpack.c.l.b16 %v228
        %v298 = vunpack.c.l.b16 %v229
        %v299 = vunpack.c.l.b16 %v230
        %v300 = vunpack.c.l.b16 %v231
        %v301 = vpack.c.b16 %v270, %v269
        %v302 = vpack.c.b16 %v272, %v271
        %v303 = vpack.c.b16 %v274, %v273
        %v304 = vpack.c.b16 %v276, %v275
        %v305 = vpack.c.b16 %v278, %v277
        %v306 = vpack.c.b16 %v280, %v279
        %v307 = vpack.c.b16 %v282, %v281
        %v308 = vpack.c.b16 %v284, %v283
        %v309 = vpack.c.b16 %v286, %v285
        %v310 = vpack.c.b16 %v288, %v287
        %v311 = vpack.c.b16 %v290, %v289
        %v312 = vpack.c.b16 %v292, %v291
        %v313 = vpack.c.b16 %v294, %v293
        %v314 = vpack.c.b16 %v296, %v295
        %v315 = vpack.c.b16 %v298, %v297
        %v316 = vpack.c.b16 %v300, %v299
        %v322 = vunpack.c.l.b16 %v232
        %v323 = vunpack.c.l.b16 %v233
        %v324 = vunpack.c.l.b16 %v234
        %v325 = vunpack.c.l.b16 %v235
        %v326 = vunpack.c.l.b16 %v236
        %v327 = vpack.c.b16 %v323, %v322
        %v328 = vpack.c.b16 %v325, %v324
        %v329 = vpack.c.b16 %v326, %v326
        %vm332 = vcmask 293888
        %v334 = vsel %vm332, %v301, 0
        %v337 = vsel %vm332, %v302, 0
        %v340 = vsel %vm332, %v303, 0
        %v343 = vsel %vm332, %v304, 0
        %v346 = vsel %vm332, %v305, 0
        %v349 = vsel %vm332, %v306, 0
        %v352 = vsel %vm332, %v307, 0
        %v355 = vsel %vm332, %v308, 0
        %v358 = vsel %vm332, %v309, 0
        %v361 = vsel %vm332, %v310, 0
        %v364 = vsel %vm332, %v311, 0
        %v367 = vsel %vm332, %v312, 0
        %v370 = vsel %vm332, %v313, 0
        %v373 = vsel %vm332, %v314, 0
        %v376 = vsel %vm332, %v315, 0
        %v379 = vsel %vm332, %v316, 0
        %vm381 = vcmask 1041408
        %v383 = vsel %vm381, %v329, 0
        %385 = vmatpush.bf16.msra.mxu0 0
        %386 = vmatpush.bf16.msra.mxu0 0
        %387 = vmatpush.bf16.msra.mxu0 0
        %388 = vmatpush.bf16.msra.mxu0 0
        %389 = vmatpush.bf16.msra.mxu0 0
        %390 = vmatpush.bf16.msra.mxu0 %v383
        %391 = vmatpush.bf16.msra.mxu0 %v328
        %392 = vmatpush.bf16.msra.mxu0 %v327
        %393 = vmatmul.bf16.gmra.mxu0 %v334
        %v394 = vpop.f32.mrf.mxu0
        %v395 = vadd.f32 0.0, %v394
        %v396 = vpop.f32.mrf.mxu0
        %v397 = vadd.f32 0.0, %v396
        %398 = vmatmul.bf16.gmra.mxu0 %v337
        %v399 = vpop.f32.mrf.mxu0
        %v400 = vadd.f32 0.0, %v399
        %v401 = vpop.f32.mrf.mxu0
        %v402 = vadd.f32 0.0, %v401
        %403 = vmatmul.bf16.gmra.mxu0 %v340
        %v404 = vpop.f32.mrf.mxu0
        %v405 = vadd.f32 0.0, %v404
        %v406 = vpop.f32.mrf.mxu0
        %v407 = vadd.f32 0.0, %v406
        %408 = vmatmul.bf16.gmra.mxu0 %v343
        %v409 = vpop.f32.mrf.mxu0
        %v410 = vadd.f32 0.0, %v409
        %v411 = vpop.f32.mrf.mxu0
        %v412 = vadd.f32 0.0, %v411
        %413 = vmatmul.bf16.gmra.mxu0 %v346
        %v414 = vpop.f32.mrf.mxu0
        %v415 = vadd.f32 0.0, %v414
        %v416 = vpop.f32.mrf.mxu0
        %v417 = vadd.f32 0.0, %v416
        %418 = vmatmul.bf16.gmra.mxu0 %v349
        %v419 = vpop.f32.mrf.mxu0
        %v420 = vadd.f32 0.0, %v419
        %v421 = vpop.f32.mrf.mxu0
        %v422 = vadd.f32 0.0, %v421
        %423 = vmatmul.bf16.gmra.mxu0 %v352
        %v424 = vpop.f32.mrf.mxu0
        %v425 = vadd.f32 0.0, %v424
        %v426 = vpop.f32.mrf.mxu0
        %v427 = vadd.f32 0.0, %v426
        %428 = vmatmul.bf16.gmra.mxu0 %v355
        %v429 = vpop.f32.mrf.mxu0
        %v430 = vadd.f32 0.0, %v429
        %v431 = vpop.f32.mrf.mxu0
        %v432 = vadd.f32 0.0, %v431
        %433 = vmatmul.bf16.gmra.mxu0 %v358
        %v434 = vpop.f32.mrf.mxu0
        %v435 = vadd.f32 0.0, %v434
        %v436 = vpop.f32.mrf.mxu0
        %v437 = vadd.f32 0.0, %v436
        %438 = vmatmul.bf16.gmra.mxu0 %v361
        %v439 = vpop.f32.mrf.mxu0
        %v440 = vadd.f32 0.0, %v439
        %v441 = vpop.f32.mrf.mxu0
        %v442 = vadd.f32 0.0, %v441
        %443 = vmatmul.bf16.gmra.mxu0 %v364
        %v444 = vpop.f32.mrf.mxu0
        %v445 = vadd.f32 0.0, %v444
        %v446 = vpop.f32.mrf.mxu0
        %v447 = vadd.f32 0.0, %v446
        %448 = vmatmul.bf16.gmra.mxu0 %v367
        %v449 = vpop.f32.mrf.mxu0
        %v450 = vadd.f32 0.0, %v449
        %v451 = vpop.f32.mrf.mxu0
        %v452 = vadd.f32 0.0, %v451
        %453 = vmatmul.bf16.gmra.mxu0 %v370
        %v454 = vpop.f32.mrf.mxu0
        %v455 = vadd.f32 0.0, %v454
        %v456 = vpop.f32.mrf.mxu0
        %v457 = vadd.f32 0.0, %v456
        %458 = vmatmul.bf16.gmra.mxu0 %v373
        %v459 = vpop.f32.mrf.mxu0
        %v460 = vadd.f32 0.0, %v459
        %v461 = vpop.f32.mrf.mxu0
        %v462 = vadd.f32 0.0, %v461
        %463 = vmatmul.bf16.gmra.mxu0 %v376
        %v464 = vpop.f32.mrf.mxu0
        %v465 = vadd.f32 0.0, %v464
        %v466 = vpop.f32.mrf.mxu0
        %v467 = vadd.f32 0.0, %v466
        %468 = vmatmul.bf16.gmra.mxu0 %v379
        %v469 = vpop.f32.mrf.mxu0
        %v470 = vadd.f32 0.0, %v469
        %v471 = vpop.f32.mrf.mxu0
        %v472 = vadd.f32 0.0, %v471
        %473 = vdwg.mxu0
        %v474 = vld [vmem:[%s2] sm:$0x1]
        %v476 = vperm.slane %v474, 0
        %v478 = vmul.f32 %v395, %v476
        %v479 = vmul.f32 %v397, %v476
        %v480 = vmul.f32 %v400, %v476
        %v481 = vmul.f32 %v402, %v476
        %v482 = vmul.f32 %v405, %v476
        %v483 = vmul.f32 %v407, %v476
        %v484 = vmul.f32 %v410, %v476
        %v485 = vmul.f32 %v412, %v476
        %v486 = vmul.f32 %v415, %v476
        %v487 = vmul.f32 %v417, %v476
        %v488 = vmul.f32 %v420, %v476
        %v489 = vmul.f32 %v422, %v476
        %v490 = vmul.f32 %v425, %v476
        %v491 = vmul.f32 %v427, %v476
        %v492 = vmul.f32 %v430, %v476
        %v493 = vmul.f32 %v432, %v476
        %v494 = vmul.f32 %v435, %v476
        %v495 = vmul.f32 %v437, %v476
        %v496 = vmul.f32 %v440, %v476
        %v497 = vmul.f32 %v442, %v476
        %v498 = vmul.f32 %v445, %v476
        %v499 = vmul.f32 %v447, %v476
        %v500 = vmul.f32 %v450, %v476
        %v501 = vmul.f32 %v452, %v476
        %v502 = vmul.f32 %v455, %v476
        %v503 = vmul.f32 %v457, %v476
        %v504 = vmul.f32 %v460, %v476
        %v505 = vmul.f32 %v462, %v476
        %v506 = vmul.f32 %v465, %v476
        %v507 = vmul.f32 %v467, %v476
        %v508 = vmul.f32 %v470, %v476
        %v509 = vmul.f32 %v472, %v476
        %v510 = vld [vmem:[%s3] sm:$0x1]
        %v512 = vperm.slane %v510, 0
        %v514 = vadd.f32 %v478, %v512
        %v515 = vadd.f32 %v479, %v512
        %v516 = vadd.f32 %v480, %v512
        %v517 = vadd.f32 %v481, %v512
        %v518 = vadd.f32 %v482, %v512
        %v519 = vadd.f32 %v483, %v512
        %v520 = vadd.f32 %v484, %v512
        %v521 = vadd.f32 %v485, %v512
        %v522 = vadd.f32 %v486, %v512
        %v523 = vadd.f32 %v487, %v512
        %v524 = vadd.f32 %v488, %v512
        %v525 = vadd.f32 %v489, %v512
        %v526 = vadd.f32 %v490, %v512
        %v527 = vadd.f32 %v491, %v512
        %v528 = vadd.f32 %v492, %v512
        %v529 = vadd.f32 %v493, %v512
        %v530 = vadd.f32 %v494, %v512
        %v531 = vadd.f32 %v495, %v512
        %v532 = vadd.f32 %v496, %v512
        %v533 = vadd.f32 %v497, %v512
        %v534 = vadd.f32 %v498, %v512
        %v535 = vadd.f32 %v499, %v512
        %v536 = vadd.f32 %v500, %v512
        %v537 = vadd.f32 %v501, %v512
        %v538 = vadd.f32 %v502, %v512
        %v539 = vadd.f32 %v503, %v512
        %v540 = vadd.f32 %v504, %v512
        %v541 = vadd.f32 %v505, %v512
        %v542 = vadd.f32 %v506, %v512
        %v543 = vadd.f32 %v507, %v512
        %v544 = vadd.f32 %v508, %v512
        %v545 = vadd.f32 %v509, %v512
        %v546 = vmax.f32 %v514, 0.0
        %v547 = vmax.f32 %v515, 0.0
        %v548 = vmax.f32 %v516, 0.0
        %v549 = vmax.f32 %v517, 0.0
        %v550 = vmax.f32 %v518, 0.0
        %v551 = vmax.f32 %v519, 0.0
        %v552 = vmax.f32 %v520, 0.0
        %v553 = vmax.f32 %v521, 0.0
        %v554 = vmax.f32 %v522, 0.0
        %v555 = vmax.f32 %v523, 0.0
        %v556 = vmax.f32 %v524, 0.0
        %v557 = vmax.f32 %v525, 0.0
        %v558 = vmax.f32 %v526, 0.0
        %v559 = vmax.f32 %v527, 0.0
        %v560 = vmax.f32 %v528, 0.0
        %v561 = vmax.f32 %v529, 0.0
        %v562 = vmax.f32 %v530, 0.0
        %v563 = vmax.f32 %v531, 0.0
        %v564 = vmax.f32 %v532, 0.0
        %v565 = vmax.f32 %v533, 0.0
        %v566 = vmax.f32 %v534, 0.0
        %v567 = vmax.f32 %v535, 0.0
        %v568 = vmax.f32 %v536, 0.0
        %v569 = vmax.f32 %v537, 0.0
        %v570 = vmax.f32 %v538, 0.0
        %v571 = vmax.f32 %v539, 0.0
        %v572 = vmax.f32 %v540, 0.0
        %v573 = vmax.f32 %v541, 0.0
        %v574 = vmax.f32 %v542, 0.0
        %v575 = vmax.f32 %v543, 0.0
        %v576 = vmax.f32 %v544, 0.0
        %v577 = vmax.f32 %v545, 0.0
        %578 = vst [vmem:[%s191] sm:$0xff] %v546
        %579 = vst [vmem:[%s191 + $0x8] sm:$0xff] %v547
        %580 = vst [vmem:[%s191 + $0x10] sm:$0xff] %v548
        %581 = vst [vmem:[%s191 + $0x18] sm:$0xff] %v549
        %582 = vst [vmem:[%s191 + $0x20] sm:$0xff] %v550
        %583 = vst [vmem:[%s191 + $0x28] sm:$0xff] %v551
        %584 = vst [vmem:[%s191 + $0x30] sm:$0xff] %v552
        %585 = vst [vmem:[%s191 + $0x38] sm:$0xff] %v553
        %586 = vst [vmem:[%s191 + $0x40] sm:$0xff] %v554
        %587 = vst [vmem:[%s191 + $0x48] sm:$0xff] %v555
        %588 = vst [vmem:[%s191 + $0x50] sm:$0xff] %v556
        %589 = vst [vmem:[%s191 + $0x58] sm:$0xff] %v557
        %590 = vst [vmem:[%s191 + $0x60] sm:$0xff] %v558
        %591 = vst [vmem:[%s191 + $0x68] sm:$0xff] %v559
        %592 = vst [vmem:[%s191 + $0x70] sm:$0xff] %v560
        %593 = vst [vmem:[%s191 + $0x78] sm:$0xff] %v561
        %594 = vst [vmem:[%s191 + $0x80] sm:$0xff] %v562
        %595 = vst [vmem:[%s191 + $0x88] sm:$0xff] %v563
        %596 = vst [vmem:[%s191 + $0x90] sm:$0xff] %v564
        %597 = vst [vmem:[%s191 + $0x98] sm:$0xff] %v565
        %598 = vst [vmem:[%s191 + $0xa0] sm:$0xff] %v566
        %599 = vst [vmem:[%s191 + $0xa8] sm:$0xff] %v567
        %600 = vst [vmem:[%s191 + $0xb0] sm:$0xff] %v568
        %601 = vst [vmem:[%s191 + $0xb8] sm:$0xff] %v569
        %602 = vst [vmem:[%s191 + $0xc0] sm:$0xff] %v570
        %603 = vst [vmem:[%s191 + $0xc8] sm:$0xff] %v571
        %604 = vst [vmem:[%s191 + $0xd0] sm:$0xff] %v572
        %605 = vst [vmem:[%s191 + $0xd8] sm:$0xff] %v573
        %606 = vst [vmem:[%s191 + $0xe0] sm:$0xff] %v574
        %607 = vst [vmem:[%s191 + $0xe8] sm:$0xff] %v575
        %608 = vst [vmem:[%s191 + $0xf0] sm:$0xff] %v576
        %609 = vst [vmem:[%s191 + $0xf8] sm:$0xff] %v577
        %s610 = sand.u32 %s115, 1
        %s611 = scalar_lea.sflag [#allocation3], %s610
        %s612 = sand.u32 %s115, 1
        %s613 = smul.addr %s612, 256
        %s614 = scalar_lea.vmem [#allocation2], %s613
        // Predicated region
        $region37: #{tpu_custom_call.1} parent=35 // pred_check
          %p615 = pneg %p125
        $region38: #{tpu_custom_call.1} parent=35 // pred_check_branch
          %617 = sbr.rel (%p615) target = $region40
        $region39: #{tpu_custom_call.1} parent=35 // pred_region
          %s618 = smul.u32 32, %s18
          %620 = vsyncadd %s611, 0
          %s621 = smul.addr %s618, 8
          %s622 = scalar_lea.hbm %s4, %s621
          %s623 = sshll.u32 %s614, 4
          %s624 = int_to_ptr.vmem [resolvable:$true] %s623
          %s625 = sshll.u32 %s622, 4
          %s626 = int_to_ptr.hbm [resolvable:$true] %s625
          %631 = dma.vmem_to_hbm [thread:$0]  %s624, 4096, %s626, %s611, 128, 128, 8
        $region40: #{tpu_custom_call.1} parent=35 // pred_fallthru
          _
      $region36: #{tpu_custom_call.1} parent=5 // pred_fallthru
        _
      %p632 = scmp.le.s32.totalorder 2, %s13
      // Predicated region
      $region41: #{tpu_custom_call.1} parent=5 // pred_check
        %p633 = pneg %p632
      $region42: #{tpu_custom_call.1} parent=5 // pred_check_branch
        %635 = sbr.rel (%p633) target = $region44
      $region43: #{tpu_custom_call.1} parent=5 // pred_region
        %s636 = ssub.s32 %s13, 2
        // Predicated region
        $region45: #{tpu_custom_call.1} parent=43 // pred_check
          %p637 = pneg %p131
        $region46: #{tpu_custom_call.1} parent=43 // pred_check_branch
          %639 = sbr.rel (%p637) target = $region48
        $region47: #{tpu_custom_call.1} parent=43 // pred_region
          %s640 = sand.u32 %s116, 1
          %s641 = scalar_lea.sflag [#allocation3], %s640
          %s642 = sand.u32 %s116, 1
          %s643 = smul.addr %s642, 256
          %s644 = scalar_lea.vmem [#allocation2], %s643
          %646 = dma.done %s641, 4096
        $region48: #{tpu_custom_call.1} parent=43 // pred_fallthru
          _
      $region44: #{tpu_custom_call.1} parent=5 // pred_fallthru
        _
    $region6: #{tpu_custom_call.1} parent=1 // loop_footer
      %s17 = sadd.s32 1, %s13
    $region7: #{tpu_custom_call.1} parent=1 // loop_footer_branch
      %12 = sbr.rel target = $region3
    $region8: #{tpu_custom_call.1} parent=1 // loop_exit
      _
    %647 = vsyncpa [#allocation3], 1
    %s648 = scalar_lea.sflag [#allocation3], 1
    %649 = vsyncpa %s648, 1

</llo_original>
